<compile_context>
chip_gen: v6e
topology: v6e:2x2x1
jax: 0.10.0
libtpu: 0.0.40
codegen_flags: <defaults>
</compile_context>

<pallas_src>
import jax
import jax.numpy as jnp
from jax.experimental import pallas as pl
from jax.experimental.pallas import tpu as pltpu

W_MAP = 5.0
W_FINAL = 2.0
DICE_SMOOTH = 1.0
LANES = 128
MAX_TILE_ROWS = 1024      # 512 KiB per f32 input tile; 4 inputs x 2 buffers ~ 4 MiB VMEM
NUM_CORES = 2             # leading 'parallel' axis: ~2x on v7x megacore, negligible elsewhere
PAD_LOGIT = -100.0        # sigmoid(-100) ~ 0 and log1p(exp(-100)) ~ 0 -> padding adds ~0


def _cdiv(a, b):
    return (a + b - 1) // b


def _round_up(x, m):
    return _cdiv(x, m) * m


def _loss_kernel(pe_ref, te_ref, pf_ref, tf_ref, out_ref,
                 acc_be, acc_bf, acc_s, acc_i, acc_t):
    i = pl.program_id(1)

    @pl.when(i == 0)
    def _init():
        acc_be[...] = jnp.zeros_like(acc_be)
        acc_bf[...] = jnp.zeros_like(acc_bf)
        acc_s[...] = jnp.zeros_like(acc_s)
        acc_i[...] = jnp.zeros_like(acc_i)
        acc_t[...] = jnp.zeros_like(acc_t)

    xe = pe_ref[...].astype(jnp.float32)
    ye = te_ref[...].astype(jnp.float32)
    xf = pf_ref[...].astype(jnp.float32)
    yf = tf_ref[...].astype(jnp.float32)

    # Numerically-stable BCE-with-logits: max(x,0) - x*y + log1p(exp(-|x|))
    ee = jnp.exp(-jnp.abs(xe))
    bce_e = jnp.maximum(xe, 0.0) - xe * ye + jnp.log1p(ee)

    # Final map: reuse exp(-|x|) for both the BCE term and the sigmoid (dice).
    ef = jnp.exp(-jnp.abs(xf))
    bce_f = jnp.maximum(xf, 0.0) - xf * yf + jnp.log1p(ef)
    recip = pl.reciprocal(1.0 + ef, approx=True)
    sig = jnp.where(xf >= 0.0, recip, ef * recip)

    tr = xe.shape[0]  # static tile rows, multiple of 8

    def vreg_partial(v):
        # (tile_rows, 128) -> (8, 128): sum of sublane-groups, i.e. pure
        # elementwise vreg adds on the VPU.
        return jnp.sum(v.reshape(tr // 8, 8, LANES), axis=0)

    acc_be[...] += vreg_partial(bce_e)
    acc_bf[...] += vreg_partial(bce_f)
    acc_s[...] += vreg_partial(sig)
    acc_i[...] += vreg_partial(sig * yf)
    acc_t[...] += vreg_partial(yf)

    @pl.when(i == pl.num_programs(1) - 1)
    def _finalize():
        out_ref[0, 0, :, :] = acc_be[...]
        out_ref[0, 1, :, :] = acc_bf[...]
        out_ref[0, 2, :, :] = acc_s[...]
        out_ref[0, 3, :, :] = acc_i[...]
        out_ref[0, 4, :, :] = acc_t[...]


def _loss_refine_maps(pred_edge, pred_final, target, target_edge):
    """Core entry point operating on the two maps directly (same shapes)."""
    n = int(pred_final.size)
    rows = _cdiv(n, LANES)
    rows_per_core = _cdiv(rows, NUM_CORES)
    tile_rows = max(8, min(MAX_TILE_ROWS, _round_up(rows_per_core, 8)))
    tiles_per_core = max(1, _cdiv(rows_per_core, tile_rows))
    padded_rows = NUM_CORES * tiles_per_core * tile_rows
    padded_n = padded_rows * LANES

    def flat(a, pad_value):
        a = a.reshape(-1)  # keep native dtype; cast happens in-kernel
        if padded_n != n:
            a = jnp.pad(a, (0, padded_n - n), constant_values=pad_value)
        return a.reshape(padded_rows, LANES)

    in_spec = pl.BlockSpec((tile_rows, LANES),
                           lambda c, i: (c * tiles_per_core + i, 0))

    partials = pl.pallas_call(
        _loss_kernel,
        out_shape=jax.ShapeDtypeStruct((NUM_CORES, 5, 8, LANES), jnp.float32),
        grid=(NUM_CORES, tiles_per_core),
        in_specs=[in_spec, in_spec, in_spec, in_spec],
        out_specs=pl.BlockSpec((1, 5, 8, LANES), lambda c, i: (c, 0, 0, 0)),
        scratch_shapes=[
            pltpu.VMEM((8, LANES), jnp.float32),
            pltpu.VMEM((8, LANES), jnp.float32),
            pltpu.VMEM((8, LANES), jnp.float32),
            pltpu.VMEM((8, LANES), jnp.float32),
            pltpu.VMEM((8, LANES), jnp.float32),
        ],
        compiler_params=pltpu.CompilerParams(
            dimension_semantics=("parallel", "arbitrary"),
            vmem_limit_bytes=32 * 1024 * 1024),
    )(
        flat(pred_edge, PAD_LOGIT),
        flat(target_edge, 0.0),
        flat(pred_final, PAD_LOGIT),
        flat(target, 0.0),
    )

    # Tiny final combine (a handful of scalar flops) in plain JAX.
    sums = jnp.sum(partials, axis=(0, 2, 3))  # [bce_edge, bce_fin, sum_sig, inter, sum_t]
    inv_n = 1.0 / float(n)
    bce_edge_mean = sums[0] * inv_n
    bce_fin_mean = sums[1] * inv_n
    dice = 1.0 - (2.0 * sums[3] + DICE_SMOOTH) / (sums[2] + sums[4] + DICE_SMOOTH)
    return W_MAP * bce_edge_mean + W_FINAL * (bce_fin_mean + dice)


def loss_refine(pred, target, target_edge):
    """Mirror of LossRefine.forward: `pred` is a sequence of maps; only
    pred[-2] (edge map) and pred[-1] (final map) are used."""
    return _loss_refine_maps(pred[-2], pred[-1], target, target_edge)


def loss_refine_ref(pred, target, target_edge):
    """Plain-JAX reference for sanity checking."""
    def bce(x, y):
        x = x.astype(jnp.float32)
        y = y.astype(jnp.float32)
        return jnp.mean(jnp.maximum(x, 0.0) - x * y + jnp.log1p(jnp.exp(-jnp.abs(x))))

    pf = pred[-1].astype(jnp.float32)
    tg = target.astype(jnp.float32)
    sig = jax.nn.sigmoid(pf)
    inter = jnp.sum(sig * tg)
    dice = 1.0 - (2.0 * inter + DICE_SMOOTH) / (jnp.sum(sig) + jnp.sum(tg) + DICE_SMOOTH)
    return W_MAP * bce(pred[-2], target_edge) + W_FINAL * (bce(pred[-1], target) + dice)


if __name__ == "__main__":
    # The PyTorch module receives a list of NCHW maps; only the last two are used.
    B, C, H, W = 2, 1, 16, 16
    key = jax.random.PRNGKey(0)
    k1, k2, k3, k4 = jax.random.split(key, 4)

    pred_edge = jax.random.normal(k1, (B, C, H, W), dtype=jnp.float32)
    pred_final = jax.random.normal(k2, (B, C, H, W), dtype=jnp.float32)
    pred = [pred_edge, pred_final]
    target = (jax.random.uniform(k3, (B, C, H, W)) > 0.5).astype(jnp.float32)
    target_edge = (jax.random.uniform(k4, (B, C, H, W)) > 0.5).astype(jnp.float32)

    out = loss_refine(pred, target, target_edge)
    jax.block_until_ready(out)

    ref = loss_refine_ref(pred, target, target_edge)
    # approx=True reciprocal in the in-kernel sigmoid => slightly looser tolerance.
    assert jnp.allclose(out, ref, rtol=2e-3, atol=2e-3), (out, ref)

    print("KERNEL_OK")
</pallas_src>

<mosaic_0001>
module attributes {stable_mosaic.version = 11 : i64} {
  func.func @_loss_kernel(%arg0: i32, %arg1: i32, %arg2: memref<8x128xf32, #tpu.memory_space<vmem>>, %arg3: memref<8x128xf32, #tpu.memory_space<vmem>>, %arg4: memref<8x128xf32, #tpu.memory_space<vmem>>, %arg5: memref<8x128xf32, #tpu.memory_space<vmem>>, %arg6: memref<1x5x8x128xf32, #tpu.memory_space<vmem>>, %arg7: memref<8x128xf32, #tpu.memory_space<vmem>>, %arg8: memref<8x128xf32, #tpu.memory_space<vmem>>, %arg9: memref<8x128xf32, #tpu.memory_space<vmem>>, %arg10: memref<8x128xf32, #tpu.memory_space<vmem>>, %arg11: memref<8x128xf32, #tpu.memory_space<vmem>>) attributes {dimension_semantics = [#tpu.dimension_semantics<parallel>, #tpu.dimension_semantics<arbitrary>], iteration_bounds = array<i64: 2, 1>, scalar_prefetch = 0 : i64, scratch_operands = 5 : i64, tpu.core_type = #tpu.core_type<tc>, window_params = [{transform_indices = @transform_0, window_bounds = array<i64: 8, 128>}, {transform_indices = @transform_1, window_bounds = array<i64: 8, 128>}, {transform_indices = @transform_2, window_bounds = array<i64: 8, 128>}, {transform_indices = @transform_3, window_bounds = array<i64: 8, 128>}, {transform_indices = @transform_4, window_bounds = array<i64: 1, 5, 8, 128>}]} {
    %c0_i32 = arith.constant 0 : i32
    %0 = arith.cmpi eq, %arg1, %c0_i32 : i32
    %1 = arith.extui %0 : i1 to i32
    %c0_i32_0 = arith.constant 0 : i32
    %2 = arith.cmpi ne, %1, %c0_i32_0 : i32
    scf.if %2 {
      %cst_40 = arith.constant 0.000000e+00 : f32
      %63 = vector.broadcast %cst_40 : f32 to vector<8x128xf32>
      %c0_41 = arith.constant 0 : index
      %c0_42 = arith.constant 0 : index
      %64 = vector.load %arg7[%c0_41, %c0_42] : memref<8x128xf32, #tpu.memory_space<vmem>>, vector<8x128xf32>
      tpu.vector_store %arg7[%c0_41, %c0_42], %63 {strides = array<i32>} : memref<8x128xf32, #tpu.memory_space<vmem>>, vector<8x128xf32>,
      %cst_43 = arith.constant 0.000000e+00 : f32
      %65 = vector.broadcast %cst_43 : f32 to vector<8x128xf32>
      %c0_44 = arith.constant 0 : index
      %c0_45 = arith.constant 0 : index
      %66 = vector.load %arg8[%c0_44, %c0_45] : memref<8x128xf32, #tpu.memory_space<vmem>>, vector<8x128xf32>
      tpu.vector_store %arg8[%c0_44, %c0_45], %65 {strides = array<i32>} : memref<8x128xf32, #tpu.memory_space<vmem>>, vector<8x128xf32>,
      %cst_46 = arith.constant 0.000000e+00 : f32
      %67 = vector.broadcast %cst_46 : f32 to vector<8x128xf32>
      %c0_47 = arith.constant 0 : index
      %c0_48 = arith.constant 0 : index
      %68 = vector.load %arg9[%c0_47, %c0_48] : memref<8x128xf32, #tpu.memory_space<vmem>>, vector<8x128xf32>
      tpu.vector_store %arg9[%c0_47, %c0_48], %67 {strides = array<i32>} : memref<8x128xf32, #tpu.memory_space<vmem>>, vector<8x128xf32>,
      %cst_49 = arith.constant 0.000000e+00 : f32
      %69 = vector.broadcast %cst_49 : f32 to vector<8x128xf32>
      %c0_50 = arith.constant 0 : index
      %c0_51 = arith.constant 0 : index
      %70 = vector.load %arg10[%c0_50, %c0_51] : memref<8x128xf32, #tpu.memory_space<vmem>>, vector<8x128xf32>
      tpu.vector_store %arg10[%c0_50, %c0_51], %69 {strides = array<i32>} : memref<8x128xf32, #tpu.memory_space<vmem>>, vector<8x128xf32>,
      %cst_52 = arith.constant 0.000000e+00 : f32
      %71 = vector.broadcast %cst_52 : f32 to vector<8x128xf32>
      %c0_53 = arith.constant 0 : index
      %c0_54 = arith.constant 0 : index
      %72 = vector.load %arg11[%c0_53, %c0_54] : memref<8x128xf32, #tpu.memory_space<vmem>>, vector<8x128xf32>
      tpu.vector_store %arg11[%c0_53, %c0_54], %71 {strides = array<i32>} : memref<8x128xf32, #tpu.memory_space<vmem>>, vector<8x128xf32>,
    } else {
    }
    %c0 = arith.constant 0 : index
    %c0_1 = arith.constant 0 : index
    %3 = vector.load %arg2[%c0, %c0_1] : memref<8x128xf32, #tpu.memory_space<vmem>>, vector<8x128xf32>
    %c0_2 = arith.constant 0 : index
    %c0_3 = arith.constant 0 : index
    %4 = vector.load %arg3[%c0_2, %c0_3] : memref<8x128xf32, #tpu.memory_space<vmem>>, vector<8x128xf32>
    %c0_4 = arith.constant 0 : index
    %c0_5 = arith.constant 0 : index
    %5 = vector.load %arg4[%c0_4, %c0_5] : memref<8x128xf32, #tpu.memory_space<vmem>>, vector<8x128xf32>
    %c0_6 = arith.constant 0 : index
    %c0_7 = arith.constant 0 : index
    %6 = vector.load %arg5[%c0_6, %c0_7] : memref<8x128xf32, #tpu.memory_space<vmem>>, vector<8x128xf32>
    %7 = math.absf %3 : vector<8x128xf32>
    %cst = arith.constant 0.000000e+00 : f32
    %8 = vector.broadcast %cst : f32 to vector<8x128xf32>
    %9 = arith.subf %8, %7 : vector<8x128xf32>
    %10 = math.exp %9 : vector<8x128xf32>
    %cst_8 = arith.constant 0.000000e+00 : f32
    %11 = vector.broadcast %cst_8 : f32 to vector<8x128xf32>
    %12 = arith.maximumf %3, %11 : vector<8x128xf32>
    %13 = arith.mulf %3, %4 : vector<8x128xf32>
    %14 = arith.subf %12, %13 : vector<8x128xf32>
    %15 = math.log1p %10 : vector<8x128xf32>
    %16 = arith.addf %14, %15 : vector<8x128xf32>
    %17 = math.absf %5 : vector<8x128xf32>
    %cst_9 = arith.constant 0.000000e+00 : f32
    %18 = vector.broadcast %cst_9 : f32 to vector<8x128xf32>
    %19 = arith.subf %18, %17 : vector<8x128xf32>
    %20 = math.exp %19 : vector<8x128xf32>
    %cst_10 = arith.constant 0.000000e+00 : f32
    %21 = vector.broadcast %cst_10 : f32 to vector<8x128xf32>
    %22 = arith.maximumf %5, %21 : vector<8x128xf32>
    %23 = arith.mulf %5, %6 : vector<8x128xf32>
    %24 = arith.subf %22, %23 : vector<8x128xf32>
    %25 = math.log1p %20 : vector<8x128xf32>
    %26 = arith.addf %24, %25 : vector<8x128xf32>
    %cst_11 = arith.constant 1.000000e+00 : f32
    %27 = vector.broadcast %cst_11 : f32 to vector<8x128xf32>
    %28 = arith.addf %27, %20 : vector<8x128xf32>
    %29 = tpu.reciprocal %28 {approx = true} : vector<8x128xf32> -> vector<8x128xf32>
    %cst_12 = arith.constant 0.000000e+00 : f32
    %30 = vector.broadcast %cst_12 : f32 to vector<8x128xf32>
    %31 = arith.cmpf oge, %5, %30 : vector<8x128xf32>
    %32 = arith.mulf %20, %29 : vector<8x128xf32>
    %33 = arith.select %31, %29, %32 : vector<8x128xi1>, vector<8x128xf32>
    %c0_13 = arith.constant 0 : index
    %c0_14 = arith.constant 0 : index
    %34 = vector.load %arg7[%c0_13, %c0_14] : memref<8x128xf32, #tpu.memory_space<vmem>>, vector<8x128xf32>
    %35 = vector.shape_cast %16 : vector<8x128xf32> to vector<1x8x128xf32>
    %cst_15 = arith.constant dense<0.000000e+00> : vector<8x128xf32>
    %36 = vector.multi_reduction <add>, %35, %cst_15 [0] : vector<1x8x128xf32> to vector<8x128xf32>
    %37 = arith.addf %34, %36 : vector<8x128xf32>
    %c0_16 = arith.constant 0 : index
    %c0_17 = arith.constant 0 : index
    %38 = vector.load %arg7[%c0_16, %c0_17] : memref<8x128xf32, #tpu.memory_space<vmem>>, vector<8x128xf32>
    tpu.vector_store %arg7[%c0_16, %c0_17], %37 {strides = array<i32>} : memref<8x128xf32, #tpu.memory_space<vmem>>, vector<8x128xf32>,
    %c0_18 = arith.constant 0 : index
    %c0_19 = arith.constant 0 : index
    %39 = vector.load %arg8[%c0_18, %c0_19] : memref<8x128xf32, #tpu.memory_space<vmem>>, vector<8x128xf32>
    %40 = vector.shape_cast %26 : vector<8x128xf32> to vector<1x8x128xf32>
    %cst_20 = arith.constant dense<0.000000e+00> : vector<8x128xf32>
    %41 = vector.multi_reduction <add>, %40, %cst_20 [0] : vector<1x8x128xf32> to vector<8x128xf32>
    %42 = arith.addf %39, %41 : vector<8x128xf32>
    %c0_21 = arith.constant 0 : index
    %c0_22 = arith.constant 0 : index
    %43 = vector.load %arg8[%c0_21, %c0_22] : memref<8x128xf32, #tpu.memory_space<vmem>>, vector<8x128xf32>
    tpu.vector_store %arg8[%c0_21, %c0_22], %42 {strides = array<i32>} : memref<8x128xf32, #tpu.memory_space<vmem>>, vector<8x128xf32>,
    %c0_23 = arith.constant 0 : index
    %c0_24 = arith.constant 0 : index
    %44 = vector.load %arg9[%c0_23, %c0_24] : memref<8x128xf32, #tpu.memory_space<vmem>>, vector<8x128xf32>
    %45 = vector.shape_cast %33 : vector<8x128xf32> to vector<1x8x128xf32>
    %cst_25 = arith.constant dense<0.000000e+00> : vector<8x128xf32>
    %46 = vector.multi_reduction <add>, %45, %cst_25 [0] : vector<1x8x128xf32> to vector<8x128xf32>
    %47 = arith.addf %44, %46 : vector<8x128xf32>
    %c0_26 = arith.constant 0 : index
    %c0_27 = arith.constant 0 : index
    %48 = vector.load %arg9[%c0_26, %c0_27] : memref<8x128xf32, #tpu.memory_space<vmem>>, vector<8x128xf32>
    tpu.vector_store %arg9[%c0_26, %c0_27], %47 {strides = array<i32>} : memref<8x128xf32, #tpu.memory_space<vmem>>, vector<8x128xf32>,
    %c0_28 = arith.constant 0 : index
    %c0_29 = arith.constant 0 : index
    %49 = vector.load %arg10[%c0_28, %c0_29] : memref<8x128xf32, #tpu.memory_space<vmem>>, vector<8x128xf32>
    %50 = arith.mulf %33, %6 : vector<8x128xf32>
    %51 = vector.shape_cast %50 : vector<8x128xf32> to vector<1x8x128xf32>
    %cst_30 = arith.constant dense<0.000000e+00> : vector<8x128xf32>
    %52 = vector.multi_reduction <add>, %51, %cst_30 [0] : vector<1x8x128xf32> to vector<8x128xf32>
    %53 = arith.addf %49, %52 : vector<8x128xf32>
    %c0_31 = arith.constant 0 : index
    %c0_32 = arith.constant 0 : index
    %54 = vector.load %arg10[%c0_31, %c0_32] : memref<8x128xf32, #tpu.memory_space<vmem>>, vector<8x128xf32>
    tpu.vector_store %arg10[%c0_31, %c0_32], %53 {strides = array<i32>} : memref<8x128xf32, #tpu.memory_space<vmem>>, vector<8x128xf32>,
    %c0_33 = arith.constant 0 : index
    %c0_34 = arith.constant 0 : index
    %55 = vector.load %arg11[%c0_33, %c0_34] : memref<8x128xf32, #tpu.memory_space<vmem>>, vector<8x128xf32>
    %56 = vector.shape_cast %6 : vector<8x128xf32> to vector<1x8x128xf32>
    %cst_35 = arith.constant dense<0.000000e+00> : vector<8x128xf32>
    %57 = vector.multi_reduction <add>, %56, %cst_35 [0] : vector<1x8x128xf32> to vector<8x128xf32>
    %58 = arith.addf %55, %57 : vector<8x128xf32>
    %c0_36 = arith.constant 0 : index
    %c0_37 = arith.constant 0 : index
    %59 = vector.load %arg11[%c0_36, %c0_37] : memref<8x128xf32, #tpu.memory_space<vmem>>, vector<8x128xf32>
    tpu.vector_store %arg11[%c0_36, %c0_37], %58 {strides = array<i32>} : memref<8x128xf32, #tpu.memory_space<vmem>>, vector<8x128xf32>,
    %c0_i32_38 = arith.constant 0 : i32
    %60 = arith.cmpi eq, %arg1, %c0_i32_38 : i32
    %61 = arith.extui %60 : i1 to i32
    %c0_i32_39 = arith.constant 0 : i32
    %62 = arith.cmpi ne, %61, %c0_i32_39 : i32
    scf.if %62 {
      %c0_40 = arith.constant 0 : index
      %c0_41 = arith.constant 0 : index
      %63 = vector.load %arg7[%c0_40, %c0_41] : memref<8x128xf32, #tpu.memory_space<vmem>>, vector<8x128xf32>
      %c0_42 = arith.constant 0 : index
      %c0_43 = arith.constant 0 : index
      %c0_44 = arith.constant 0 : index
      %c0_45 = arith.constant 0 : index
      %64 = vector.load %arg6[%c0_42, %c0_43, %c0_44, %c0_45] : memref<1x5x8x128xf32, #tpu.memory_space<vmem>>, vector<1x1x8x128xf32>
      %65 = vector.shape_cast %64 : vector<1x1x8x128xf32> to vector<8x128xf32>
      %66 = vector.shape_cast %63 : vector<8x128xf32> to vector<1x1x8x128xf32>
      tpu.vector_store %arg6[%c0_42, %c0_43, %c0_44, %c0_45], %66 {strides = array<i32>} : memref<1x5x8x128xf32, #tpu.memory_space<vmem>>, vector<1x1x8x128xf32>,
      %c0_46 = arith.constant 0 : index
      %c0_47 = arith.constant 0 : index
      %67 = vector.load %arg8[%c0_46, %c0_47] : memref<8x128xf32, #tpu.memory_space<vmem>>, vector<8x128xf32>
      %c0_48 = arith.constant 0 : index
      %c1 = arith.constant 1 : index
      %c0_49 = arith.constant 0 : index
      %c0_50 = arith.constant 0 : index
      %68 = vector.load %arg6[%c0_48, %c1, %c0_49, %c0_50] : memref<1x5x8x128xf32, #tpu.memory_space<vmem>>, vector<1x1x8x128xf32>
      %69 = vector.shape_cast %68 : vector<1x1x8x128xf32> to vector<8x128xf32>
      %70 = vector.shape_cast %67 : vector<8x128xf32> to vector<1x1x8x128xf32>
      tpu.vector_store %arg6[%c0_48, %c1, %c0_49, %c0_50], %70 {strides = array<i32>} : memref<1x5x8x128xf32, #tpu.memory_space<vmem>>, vector<1x1x8x128xf32>,
      %c0_51 = arith.constant 0 : index
      %c0_52 = arith.constant 0 : index
      %71 = vector.load %arg9[%c0_51, %c0_52] : memref<8x128xf32, #tpu.memory_space<vmem>>, vector<8x128xf32>
      %c0_53 = arith.constant 0 : index
      %c2 = arith.constant 2 : index
      %c0_54 = arith.constant 0 : index
      %c0_55 = arith.constant 0 : index
      %72 = vector.load %arg6[%c0_53, %c2, %c0_54, %c0_55] : memref<1x5x8x128xf32, #tpu.memory_space<vmem>>, vector<1x1x8x128xf32>
      %73 = vector.shape_cast %72 : vector<1x1x8x128xf32> to vector<8x128xf32>
      %74 = vector.shape_cast %71 : vector<8x128xf32> to vector<1x1x8x128xf32>
      tpu.vector_store %arg6[%c0_53, %c2, %c0_54, %c0_55], %74 {strides = array<i32>} : memref<1x5x8x128xf32, #tpu.memory_space<vmem>>, vector<1x1x8x128xf32>,
      %c0_56 = arith.constant 0 : index
      %c0_57 = arith.constant 0 : index
      %75 = vector.load %arg10[%c0_56, %c0_57] : memref<8x128xf32, #tpu.memory_space<vmem>>, vector<8x128xf32>
      %c0_58 = arith.constant 0 : index
      %c3 = arith.constant 3 : index
      %c0_59 = arith.constant 0 : index
      %c0_60 = arith.constant 0 : index
      %76 = vector.load %arg6[%c0_58, %c3, %c0_59, %c0_60] : memref<1x5x8x128xf32, #tpu.memory_space<vmem>>, vector<1x1x8x128xf32>
      %77 = vector.shape_cast %76 : vector<1x1x8x128xf32> to vector<8x128xf32>
      %78 = vector.shape_cast %75 : vector<8x128xf32> to vector<1x1x8x128xf32>
      tpu.vector_store %arg6[%c0_58, %c3, %c0_59, %c0_60], %78 {strides = array<i32>} : memref<1x5x8x128xf32, #tpu.memory_space<vmem>>, vector<1x1x8x128xf32>,
      %c0_61 = arith.constant 0 : index
      %c0_62 = arith.constant 0 : index
      %79 = vector.load %arg11[%c0_61, %c0_62] : memref<8x128xf32, #tpu.memory_space<vmem>>, vector<8x128xf32>
      %c0_63 = arith.constant 0 : index
      %c4 = arith.constant 4 : index
      %c0_64 = arith.constant 0 : index
      %c0_65 = arith.constant 0 : index
      %80 = vector.load %arg6[%c0_63, %c4, %c0_64, %c0_65] : memref<1x5x8x128xf32, #tpu.memory_space<vmem>>, vector<1x1x8x128xf32>
      %81 = vector.shape_cast %80 : vector<1x1x8x128xf32> to vector<8x128xf32>
      %82 = vector.shape_cast %79 : vector<8x128xf32> to vector<1x1x8x128xf32>
      tpu.vector_store %arg6[%c0_63, %c4, %c0_64, %c0_65], %82 {strides = array<i32>} : memref<1x5x8x128xf32, #tpu.memory_space<vmem>>, vector<1x1x8x128xf32>,
    } else {
    }
    return
  }
  func.func @transform_0(%arg0: i32, %arg1: i32) -> (i32, i32) {
    %c1_i32 = arith.constant 1 : i32
    %0 = arith.muli %arg0, %c1_i32 : i32
    %1 = arith.addi %0, %arg1 : i32
    %c0_i32 = arith.constant 0 : i32
    %c0_i32_0 = arith.constant 0 : i32
    return %1, %c0_i32 : i32, i32
  }
  func.func @transform_1(%arg0: i32, %arg1: i32) -> (i32, i32) {
    %c1_i32 = arith.constant 1 : i32
    %0 = arith.muli %arg0, %c1_i32 : i32
    %1 = arith.addi %0, %arg1 : i32
    %c0_i32 = arith.constant 0 : i32
    %c0_i32_0 = arith.constant 0 : i32
    return %1, %c0_i32 : i32, i32
  }
  func.func @transform_2(%arg0: i32, %arg1: i32) -> (i32, i32) {
    %c1_i32 = arith.constant 1 : i32
    %0 = arith.muli %arg0, %c1_i32 : i32
    %1 = arith.addi %0, %arg1 : i32
    %c0_i32 = arith.constant 0 : i32
    %c0_i32_0 = arith.constant 0 : i32
    return %1, %c0_i32 : i32, i32
  }
  func.func @transform_3(%arg0: i32, %arg1: i32) -> (i32, i32) {
    %c1_i32 = arith.constant 1 : i32
    %0 = arith.muli %arg0, %c1_i32 : i32
    %1 = arith.addi %0, %arg1 : i32
    %c0_i32 = arith.constant 0 : i32
    %c0_i32_0 = arith.constant 0 : i32
    return %1, %c0_i32 : i32, i32
  }
  func.func @transform_4(%arg0: i32, %arg1: i32) -> (i32, i32, i32, i32) {
    %c0_i32 = arith.constant 0 : i32
    %c0_i32_0 = arith.constant 0 : i32
    %c0_i32_1 = arith.constant 0 : i32
    %c0_i32_2 = arith.constant 0 : i32
    return %arg0, %c0_i32, %c0_i32_0, %c0_i32_1 : i32, i32, i32, i32
  }
}

</mosaic_0001>

<llo_original>
// kernel: tpu_custom_call.1
$region0: #{tpu_custom_call.1}
  #allocation0 [shape = 'u32[]', space=smem, size = 0x4, offset = 0x4, fixed_abs, tag = 'smem constant byte address 0x4 - core index']
  #allocation1 [shape = 'u32[144,128]{1,0:T(1,128)}', space=vmem, size = 0x12000, scoped, tag = 'internal scratch']
  #allocation2 [shape = 'f32[8,128]{1,0:T(8,128)}', space=vmem, size = 0x1000, scoped, tag = 'scratch operand']
  #allocation3 [shape = 'f32[8,128]{1,0:T(8,128)}', space=vmem, size = 0x1000, scoped, tag = 'scratch operand']
  #allocation4 [shape = 'f32[8,128]{1,0:T(8,128)}', space=vmem, size = 0x1000, scoped, tag = 'scratch operand']
  #allocation5 [shape = 'f32[8,128]{1,0:T(8,128)}', space=vmem, size = 0x1000, scoped, tag = 'scratch operand']
  #allocation6 [shape = 'f32[8,128]{1,0:T(8,128)}', space=vmem, size = 0x1000, scoped, tag = 'scratch operand']
  %s0 = inlined_call_operand.hbm [shape: f32[16,128], index: 0, kind: input, shape index: {}]
  %s1 = inlined_call_operand.hbm [shape: f32[16,128], index: 1, kind: input, shape index: {}]
  %s2 = inlined_call_operand.hbm [shape: f32[16,128], index: 2, kind: input, shape index: {}]
  %s3 = inlined_call_operand.hbm [shape: f32[16,128], index: 3, kind: input, shape index: {}]
  %s4 = inlined_call_operand.hbm [shape: f32[2,5,8,128], index: 4, kind: output, shape index: {}]
  %s5 = sld [smem:[#allocation0]]
  $region73: #{tpu_custom_call.1} parent=0
    _
  %s7 = ssub.s32 1, %s5
  %s8 = scalar_select 0, %s7, %s5
  $region1: #{tpu_custom_call.1} parent=0
    #allocation7 [shape = 'u8[8192]{0}', space=vmem, size = 0x2000, scoped, tag = 'input window, operand 0']
    #allocation8 [shape = 's32[2]{0}', space=sflag, size = 0x8, scoped, tag = 'scoped memory for tpu_custom_call.1']
    #allocation9 [shape = 's32[2]{0}', space=sflag, size = 0x8, scoped, tag = 'scoped memory for tpu_custom_call.1']
    #allocation10 [shape = 'u8[8192]{0}', space=vmem, size = 0x2000, scoped, tag = 'input window, operand 1']
    #allocation11 [shape = 's32[2]{0}', space=sflag, size = 0x8, scoped, tag = 'scoped memory for tpu_custom_call.1']
    #allocation12 [shape = 'u8[8192]{0}', space=vmem, size = 0x2000, scoped, tag = 'input window, operand 2']
    #allocation13 [shape = 'u8[8192]{0}', space=vmem, size = 0x2000, scoped, tag = 'input window, operand 3']
    #allocation14 [shape = 's32[2]{0}', space=sflag, size = 0x8, scoped, tag = 'scoped memory for tpu_custom_call.1']
    #allocation15 [shape = 'u8[40960]{0}', space=vmem, size = 0xa000, scoped, tag = 'output window, operand 0']
    %9 = vsyncpa [#allocation8], 0
    %s10 = scalar_lea.sflag [#allocation8], 1
    %11 = vsyncpa %s10, 0
    %12 = vsyncpa [#allocation11], 0
    %s13 = scalar_lea.sflag [#allocation11], 1
    %14 = vsyncpa %s13, 0
    %15 = vsyncpa [#allocation14], 0
    %s16 = scalar_lea.sflag [#allocation14], 1
    %17 = vsyncpa %s16, 0
    %18 = vsyncpa [#allocation9], 0
    %s19 = scalar_lea.sflag [#allocation9], 1
    %20 = vsyncpa %s19, 0
    loop: start=0, step=1, limit=4
    $region2: #{tpu_custom_call.1} parent=1 // loop_pre_header
      _
    $region3: #{tpu_custom_call.1} parent=1 // loop_header
      %s22 = sphi 0, %s26
      %p23 = scmp.ge.s32.totalorder %s22, 4
      %s29 = sphi 0, %s41
      %s30 = sphi 0, %s37
      %s31 = sphi 0, %s29
      %s32 = sphi 0, %s30
      %s33 = sphi 0, %s31
      %s34 = sphi 0, %s32
      %s46 = sphi 0, %s48
      %s49 = sphi 0, %s46
      %s50 = sphi 0, %s49
      %s66 = sphi 0, %s50
      %s74 = sphi 0, %s76
      %s77 = sphi 0, %s74
      %s78 = sphi 0, %s77
      %s94 = sphi 0, %s78
      %s102 = sphi 0, %s104
      %s105 = sphi 0, %s102
      %s106 = sphi 0, %s105
      %s122 = sphi 0, %s106
      %s130 = sphi 0, %s132
      %s133 = sphi 0, %s130
      %s134 = sphi 0, %s133
      %s150 = sphi 0, %s134
      %s156 = sphi 0, %s158
      %s159 = sphi 0, %s156
      %s160 = sphi 0, %s159
      %s176 = sphi 0, %s160
    $region4: #{tpu_custom_call.1} parent=1 // loop_header_branch
      %25 = sbr.rel (%p23) target = $region8
    $region5: #{tpu_custom_call.1} parent=1 // loop_body
      %s27 = ssub.s32 %s22, 1
      %s28 = ssub.s32 %s22, 2
      %s35 = sadd.s32 1, %s30
      %p36 = scmp.ge.s32.totalorder %s35, 1
      %s37 = scalar_select %p36, 0, %s35
      %s38 = sadd.s32 1, %s29
      %s39 = scalar_select %p36, %s38, %s29
      %p40 = scmp.ge.s32.totalorder %s39, 2
      %s41 = scalar_select %p40, 0, %s39
      %s42 = sadd.s32 %s29, %s30
      %s43 = sadd.s32 %s41, %s37
      %s44 = ssub.s32 %s42, %s43
      %p45 = scmp.eq.s32.totalorder %s44, 0
      %s47 = sadd.s32 %s46, 1
      %s48 = scalar_select %p45, %s46, %s47
      %p51 = pneg %p45
      %p52 = scmp.eq.s32.totalorder %s22, 1
      %p53 = por %p51, %p52
      %p54 = scmp.ne.s32.totalorder %s46, %s49
      %p55 = scmp.eq.s32.totalorder %s22, 0
      %p56 = por %p54, %p55
      %p57 = scmp.ne.s32.totalorder %s46, %s49
      %p58 = scmp.eq.s32.totalorder %s27, 1
      %p59 = por %p57, %p58
      %p60 = scmp.ne.s32.totalorder %s49, %s50
      %p61 = scmp.eq.s32.totalorder %s27, 0
      %p62 = por %p60, %p61
      %p63 = scmp.ne.s32.totalorder %s49, %s50
      %p64 = scmp.eq.s32.totalorder %s28, 1
      %p65 = por %p63, %p64
      %p67 = scmp.ne.s32.totalorder %s50, %s66
      %p68 = scmp.eq.s32.totalorder %s28, 0
      %p69 = por %p67, %p68
      %s70 = sadd.s32 %s29, %s30
      %s71 = sadd.s32 %s41, %s37
      %s72 = ssub.s32 %s70, %s71
      %p73 = scmp.eq.s32.totalorder %s72, 0
      %s75 = sadd.s32 %s74, 1
      %s76 = scalar_select %p73, %s74, %s75
      %p79 = pneg %p73
      %p80 = scmp.eq.s32.totalorder %s22, 1
      %p81 = por %p79, %p80
      %p82 = scmp.ne.s32.totalorder %s74, %s77
      %p83 = scmp.eq.s32.totalorder %s22, 0
      %p84 = por %p82, %p83
      %p85 = scmp.ne.s32.totalorder %s74, %s77
      %p86 = scmp.eq.s32.totalorder %s27, 1
      %p87 = por %p85, %p86
      %p88 = scmp.ne.s32.totalorder %s77, %s78
      %p89 = scmp.eq.s32.totalorder %s27, 0
      %p90 = por %p88, %p89
      %p91 = scmp.ne.s32.totalorder %s77, %s78
      %p92 = scmp.eq.s32.totalorder %s28, 1
      %p93 = por %p91, %p92
      %p95 = scmp.ne.s32.totalorder %s78, %s94
      %p96 = scmp.eq.s32.totalorder %s28, 0
      %p97 = por %p95, %p96
      %s98 = sadd.s32 %s29, %s30
      %s99 = sadd.s32 %s41, %s37
      %s100 = ssub.s32 %s98, %s99
      %p101 = scmp.eq.s32.totalorder %s100, 0
      %s103 = sadd.s32 %s102, 1
      %s104 = scalar_select %p101, %s102, %s103
      %p107 = pneg %p101
      %p108 = scmp.eq.s32.totalorder %s22, 1
      %p109 = por %p107, %p108
      %p110 = scmp.ne.s32.totalorder %s102, %s105
      %p111 = scmp.eq.s32.totalorder %s22, 0
      %p112 = por %p110, %p111
      %p113 = scmp.ne.s32.totalorder %s102, %s105
      %p114 = scmp.eq.s32.totalorder %s27, 1
      %p115 = por %p113, %p114
      %p116 = scmp.ne.s32.totalorder %s105, %s106
      %p117 = scmp.eq.s32.totalorder %s27, 0
      %p118 = por %p116, %p117
      %p119 = scmp.ne.s32.totalorder %s105, %s106
      %p120 = scmp.eq.s32.totalorder %s28, 1
      %p121 = por %p119, %p120
      %p123 = scmp.ne.s32.totalorder %s106, %s122
      %p124 = scmp.eq.s32.totalorder %s28, 0
      %p125 = por %p123, %p124
      %s126 = sadd.s32 %s29, %s30
      %s127 = sadd.s32 %s41, %s37
      %s128 = ssub.s32 %s126, %s127
      %p129 = scmp.eq.s32.totalorder %s128, 0
      %s131 = sadd.s32 %s130, 1
      %s132 = scalar_select %p129, %s130, %s131
      %p135 = pneg %p129
      %p136 = scmp.eq.s32.totalorder %s22, 1
      %p137 = por %p135, %p136
      %p138 = scmp.ne.s32.totalorder %s130, %s133
      %p139 = scmp.eq.s32.totalorder %s22, 0
      %p140 = por %p138, %p139
      %p141 = scmp.ne.s32.totalorder %s130, %s133
      %p142 = scmp.eq.s32.totalorder %s27, 1
      %p143 = por %p141, %p142
      %p144 = scmp.ne.s32.totalorder %s133, %s134
      %p145 = scmp.eq.s32.totalorder %s27, 0
      %p146 = por %p144, %p145
      %p147 = scmp.ne.s32.totalorder %s133, %s134
      %p148 = scmp.eq.s32.totalorder %s28, 1
      %p149 = por %p147, %p148
      %p151 = scmp.ne.s32.totalorder %s134, %s150
      %p152 = scmp.eq.s32.totalorder %s28, 0
      %p153 = por %p151, %p152
      %s154 = ssub.s32 %s29, %s41
      %p155 = scmp.eq.s32.totalorder %s154, 0
      %s157 = sadd.s32 %s156, 1
      %s158 = scalar_select %p155, %s156, %s157
      %p161 = pneg %p155
      %p162 = scmp.eq.s32.totalorder %s22, 1
      %p163 = por %p161, %p162
      %p164 = scmp.ne.s32.totalorder %s156, %s159
      %p165 = scmp.eq.s32.totalorder %s22, 0
      %p166 = por %p164, %p165
      %p167 = scmp.ne.s32.totalorder %s156, %s159
      %p168 = scmp.eq.s32.totalorder %s27, 1
      %p169 = por %p167, %p168
      %p170 = scmp.ne.s32.totalorder %s159, %s160
      %p171 = scmp.eq.s32.totalorder %s27, 0
      %p172 = por %p170, %p171
      %p173 = scmp.ne.s32.totalorder %s159, %s160
      %p174 = scmp.eq.s32.totalorder %s28, 1
      %p175 = por %p173, %p174
      %p177 = scmp.ne.s32.totalorder %s160, %s176
      %p178 = scmp.eq.s32.totalorder %s28, 0
      %p179 = por %p177, %p178
      %p180 = scmp.le.s32.totalorder 1, %s22
      %p181 = scmp.lt.s32.totalorder %s22, 3
      %p182 = pnand %p180, %p181
      %p183 = pneg %p182
      // Predicated region
      $region9: #{tpu_custom_call.1} parent=5 // pred_check
        _
      $region10: #{tpu_custom_call.1} parent=5 // pred_check_branch
        %185 = sbr.rel (%p182) target = $region12
      $region11: #{tpu_custom_call.1} parent=5 // pred_region
        %s186 = ssub.s32 %s22, 1
      $region12: #{tpu_custom_call.1} parent=5 // pred_fallthru
        _
      %p187 = scmp.lt.s32.totalorder %s22, 2
      // Predicated region
      $region13: #{tpu_custom_call.1} parent=5 // pred_check
        %p188 = pneg %p187
      $region14: #{tpu_custom_call.1} parent=5 // pred_check_branch
        %190 = sbr.rel (%p188) target = $region16
      $region15: #{tpu_custom_call.1} parent=5 // pred_region
        // Predicated region
        $region17: #{tpu_custom_call.1} parent=15 // pred_check
          %p191 = pneg %p56
        $region18: #{tpu_custom_call.1} parent=15 // pred_check_branch
          %193 = sbr.rel (%p191) target = $region20
        $region19: #{tpu_custom_call.1} parent=15 // pred_region
          %s194 = sand.u32 %s46, 1
          %s195 = scalar_lea.sflag [#allocation8], %s194
          %s196 = sand.u32 %s46, 1
          %s197 = smul.addr %s196, 8
          %s198 = scalar_lea.vmem [#allocation7], %s197
          %s199 = sadd.s32 %s29, %s30
          %s201 = ssub.s32 128, 128
          %202 = vsyncadd %s195, %s201
          %s203 = smul.addr %s199, 128
          %s204 = scalar_lea.hbm %s0, %s203
          %s206 = sshll.u32 %s198, 4
          %s207 = int_to_ptr.vmem [resolvable:$true] %s206
          %209 = dma.hbm_to_vmem [thread:$0]  %s204, 128, %s207, %s195
        $region20: #{tpu_custom_call.1} parent=15 // pred_fallthru
          _
        // Predicated region
        $region21: #{tpu_custom_call.1} parent=15 // pred_check
          %p210 = pneg %p84
        $region22: #{tpu_custom_call.1} parent=15 // pred_check_branch
          %212 = sbr.rel (%p210) target = $region24
        $region23: #{tpu_custom_call.1} parent=15 // pred_region
          %s213 = sand.u32 %s22, 1
          %s214 = scalar_lea.sflag [#allocation11], %s213
          %s215 = sand.u32 %s74, 1
          %s216 = smul.addr %s215, 8
          %s217 = scalar_lea.vmem [#allocation10], %s216
          %s218 = sadd.s32 %s29, %s30
          %s220 = ssub.s32 128, 128
          %221 = vsyncadd %s214, %s220
          %s222 = smul.addr %s218, 128
          %s223 = scalar_lea.hbm %s1, %s222
          %s225 = sshll.u32 %s217, 4
          %s226 = int_to_ptr.vmem [resolvable:$true] %s225
          %228 = dma.hbm_to_vmem [thread:$0]  %s223, 128, %s226, %s214
        $region24: #{tpu_custom_call.1} parent=15 // pred_fallthru
          _
        // Predicated region
        $region25: #{tpu_custom_call.1} parent=15 // pred_check
          %p229 = pneg %p112
        $region26: #{tpu_custom_call.1} parent=15 // pred_check_branch
          %231 = sbr.rel (%p229) target = $region28
        $region27: #{tpu_custom_call.1} parent=15 // pred_region
          %s232 = sand.u32 %s22, 1
          %s233 = scalar_lea.sflag [#allocation11], %s232
          %s234 = sand.u32 %s102, 1
          %s235 = smul.addr %s234, 8
          %s236 = scalar_lea.vmem [#allocation12], %s235
          %s237 = sadd.s32 %s29, %s30
          %s239 = ssub.s32 128, 128
          %240 = vsyncadd %s233, %s239
          %s241 = smul.addr %s237, 128
          %s242 = scalar_lea.hbm %s2, %s241
          %s244 = sshll.u32 %s236, 4
          %s245 = int_to_ptr.vmem [resolvable:$true] %s244
          %247 = dma.hbm_to_vmem [thread:$0]  %s242, 128, %s245, %s233
        $region28: #{tpu_custom_call.1} parent=15 // pred_fallthru
          _
        // Predicated region
        $region29: #{tpu_custom_call.1} parent=15 // pred_check
          %p248 = pneg %p140
        $region30: #{tpu_custom_call.1} parent=15 // pred_check_branch
          %250 = sbr.rel (%p248) target = $region32
        $region31: #{tpu_custom_call.1} parent=15 // pred_region
          %s251 = sand.u32 %s130, 1
          %s252 = scalar_lea.sflag [#allocation14], %s251
          %s253 = sand.u32 %s130, 1
          %s254 = smul.addr %s253, 8
          %s255 = scalar_lea.vmem [#allocation13], %s254
          %s256 = sadd.s32 %s29, %s30
          %s258 = ssub.s32 128, 128
          %259 = vsyncadd %s252, %s258
          %s260 = smul.addr %s256, 128
          %s261 = scalar_lea.hbm %s3, %s260
          %s263 = sshll.u32 %s255, 4
          %s264 = int_to_ptr.vmem [resolvable:$true] %s263
          %266 = dma.hbm_to_vmem [thread:$0]  %s261, 128, %s264, %s252
        $region32: #{tpu_custom_call.1} parent=15 // pred_fallthru
          _
      $region16: #{tpu_custom_call.1} parent=5 // pred_fallthru
        _
      %p267 = scmp.le.s32.totalorder 1, %s22
      %p268 = scmp.lt.s32.totalorder %s22, 3
      %p269 = pnand %p267, %p268
      %p270 = pneg %p269
      // Predicated region
      $region33: #{tpu_custom_call.1} parent=5 // pred_check
        _
      $region34: #{tpu_custom_call.1} parent=5 // pred_check_branch
        %272 = sbr.rel (%p269) target = $region36
      $region35: #{tpu_custom_call.1} parent=5 // pred_region
        %s273 = ssub.s32 %s22, 1
        %s274 = sand.u32 %s49, 1
        %s275 = scalar_lea.sflag [#allocation8], %s274
        %s276 = sand.u32 %s49, 1
        %s277 = smul.addr %s276, 8
        %s278 = scalar_lea.vmem [#allocation7], %s277
        // Predicated region
        $region37: #{tpu_custom_call.1} parent=35 // pred_check
          %p279 = pneg %p62
        $region38: #{tpu_custom_call.1} parent=35 // pred_check_branch
          %281 = sbr.rel (%p279) target = $region40
        $region39: #{tpu_custom_call.1} parent=35 // pred_region
          %282 = dma.done %s275, 128
        $region40: #{tpu_custom_call.1} parent=35 // pred_fallthru
          _
        %s283 = sand.u32 %s27, 1
        %s284 = scalar_lea.sflag [#allocation11], %s283
        %s285 = sand.u32 %s77, 1
        %s286 = smul.addr %s285, 8
        %s287 = scalar_lea.vmem [#allocation10], %s286
        // Predicated region
        $region41: #{tpu_custom_call.1} parent=35 // pred_check
          %p288 = pneg %p90
        $region42: #{tpu_custom_call.1} parent=35 // pred_check_branch
          %290 = sbr.rel (%p288) target = $region44
        $region43: #{tpu_custom_call.1} parent=35 // pred_region
          %291 = dma.done %s284, 128
        $region44: #{tpu_custom_call.1} parent=35 // pred_fallthru
          _
        %s292 = sand.u32 %s27, 1
        %s293 = scalar_lea.sflag [#allocation11], %s292
        %s294 = sand.u32 %s105, 1
        %s295 = smul.addr %s294, 8
        %s296 = scalar_lea.vmem [#allocation12], %s295
        // Predicated region
        $region45: #{tpu_custom_call.1} parent=35 // pred_check
          %p297 = pneg %p118
        $region46: #{tpu_custom_call.1} parent=35 // pred_check_branch
          %299 = sbr.rel (%p297) target = $region48
        $region47: #{tpu_custom_call.1} parent=35 // pred_region
          %300 = dma.done %s293, 128
        $region48: #{tpu_custom_call.1} parent=35 // pred_fallthru
          _
        %s301 = sand.u32 %s133, 1
        %s302 = scalar_lea.sflag [#allocation14], %s301
        %s303 = sand.u32 %s133, 1
        %s304 = smul.addr %s303, 8
        %s305 = scalar_lea.vmem [#allocation13], %s304
        // Predicated region
        $region49: #{tpu_custom_call.1} parent=35 // pred_check
          %p306 = pneg %p146
        $region50: #{tpu_custom_call.1} parent=35 // pred_check_branch
          %308 = sbr.rel (%p306) target = $region52
        $region51: #{tpu_custom_call.1} parent=35 // pred_region
          %309 = dma.done %s302, 128
        $region52: #{tpu_custom_call.1} parent=35 // pred_fallthru
          _
        %s310 = sand.u32 %s49, 1
        %s311 = scalar_lea.sflag [#allocation8], %s310
        %s312 = sand.u32 %s49, 1
        %s313 = smul.addr %s312, 8
        %s314 = scalar_lea.vmem [#allocation7], %s313
        %p315 = pneg %p62
        %p316 = pneg %p59
        %s317 = sand.u32 %s27, 1
        %s318 = scalar_lea.sflag [#allocation11], %s317
        %s319 = sand.u32 %s77, 1
        %s320 = smul.addr %s319, 8
        %s321 = scalar_lea.vmem [#allocation10], %s320
        %p322 = pneg %p90
        %p323 = pneg %p87
        %s324 = sand.u32 %s27, 1
        %s325 = scalar_lea.sflag [#allocation11], %s324
        %s326 = sand.u32 %s105, 1
        %s327 = smul.addr %s326, 8
        %s328 = scalar_lea.vmem [#allocation12], %s327
        %p329 = pneg %p118
        %p330 = pneg %p115
        %s331 = sand.u32 %s133, 1
        %s332 = scalar_lea.sflag [#allocation14], %s331
        %s333 = sand.u32 %s133, 1
        %s334 = smul.addr %s333, 8
        %s335 = scalar_lea.vmem [#allocation13], %s334
        %p336 = pneg %p146
        %p337 = pneg %p143
        %p338 = pneg %p172
        %p339 = pneg %p169
        %s340 = sand.u32 %s159, 1
        %s341 = scalar_lea.sflag [#allocation9], %s340
        %s342 = sand.u32 %s159, 1
        %s343 = smul.addr %s342, 40
        %s344 = scalar_lea.vmem [#allocation15], %s343
        %s345 = sadd.s32 %s31, %s32
        %s346 = sadd.s32 %s31, %s32
        %s347 = sadd.s32 %s31, %s32
        %s348 = sadd.s32 %s31, %s32
        %p349 = scmp.eq.s32.totalorder %s32, 0
        // Predicated region
        $region53: #{tpu_custom_call.1} parent=35 // pred_check
          %p350 = pneg %p349
        $region54: #{tpu_custom_call.1} parent=35 // pred_check_branch
          %352 = sbr.rel (%p350) target = $region56
        $region55: #{tpu_custom_call.1} parent=35 // pred_region
          %353 = vst [vmem:[#allocation2] sm:$0xff] 0.0
          %354 = vst [vmem:[#allocation3] sm:$0xff] 0.0
          %355 = vst [vmem:[#allocation4] sm:$0xff] 0.0
          %356 = vst [vmem:[#allocation5] sm:$0xff] 0.0
          %357 = vst [vmem:[#allocation6] sm:$0xff] 0.0
        $region56: #{tpu_custom_call.1} parent=35 // pred_fallthru
          _
        %v358 = vld [vmem:[%s278] sm:$0xff]
        %v359 = vld [vmem:[%s287] sm:$0xff]
        %v360 = vld [vmem:[%s296] sm:$0xff]
        %v361 = vld [vmem:[%s305] sm:$0xff]
        %v362 = vand.u32 2147483647, %v358
        %v363 = vsub.f32 0.0, %v362
        %v364 = vmul.f32 %v363, 1.442695
        %v365 = vpow.pop %v364
        %v366 = vmax.f32 %v358, 0.0
        %v367 = vmul.f32 %v358, %v359
        %v368 = vsub.f32 %v366, %v367
        %v369 = vadd.f32 %v365, 1.0
        %v370 = vlog2.pop %v369
        %v371 = vmul.f32 %v370, 0.6931472
        %v372 = vmul.f32 -0.5, %v365
        %v373 = vadd.f32 %v372, 1.0
        %v374 = vmul.f32 %v373, %v365
        %v375 = vand.u32 2147483647, %v365
        %vm376 = vcmp.lt.f32.partialorder %v375, 0.0004427343
        %v377 = vsel %vm376, %v374, %v371
        %v378 = vadd.f32 %v368, %v377
        %v379 = vand.u32 2147483647, %v360
        %v380 = vsub.f32 0.0, %v379
        %v381 = vmul.f32 %v380, 1.442695
        %v382 = vpow.pop %v381
        %v383 = vmax.f32 %v360, 0.0
        %v384 = vmul.f32 %v360, %v361
        %v385 = vsub.f32 %v383, %v384
        %v386 = vadd.f32 %v382, 1.0
        %v387 = vlog2.pop %v386
        %v388 = vmul.f32 %v387, 0.6931472
        %v389 = vmul.f32 -0.5, %v382
        %v390 = vadd.f32 %v389, 1.0
        %v391 = vmul.f32 %v390, %v382
        %v392 = vand.u32 2147483647, %v382
        %vm393 = vcmp.lt.f32.partialorder %v392, 0.0004427343
        %v394 = vsel %vm393, %v391, %v388
        %v395 = vadd.f32 %v385, %v394
        %v396 = vadd.f32 %v382, 1.0
        %v397 = vrcp.pop %v396
        %vm398 = vcmp.ge.f32.partialorder %v360, 0.0
        %v399 = vmul.f32 %v382, %v397
        %v400 = vsel %vm398, %v397, %v399
        %v401 = vld [vmem:[#allocation2] sm:$0xff]
        %v402 = vadd.f32 %v378, 0.0
        %v403 = vadd.f32 %v401, %v402
        %404 = vst [vmem:[#allocation2] sm:$0xff] %v403
        %v405 = vld [vmem:[#allocation3] sm:$0xff]
        %v406 = vadd.f32 %v395, 0.0
        %v407 = vadd.f32 %v405, %v406
        %408 = vst [vmem:[#allocation3] sm:$0xff] %v407
        %v409 = vld [vmem:[#allocation4] sm:$0xff]
        %v410 = vadd.f32 %v400, 0.0
        %v411 = vadd.f32 %v409, %v410
        %412 = vst [vmem:[#allocation4] sm:$0xff] %v411
        %v413 = vld [vmem:[#allocation5] sm:$0xff]
        %v414 = vmul.f32 %v400, %v361
        %v415 = vadd.f32 %v414, 0.0
        %v416 = vadd.f32 %v413, %v415
        %417 = vst [vmem:[#allocation5] sm:$0xff] %v416
        %v418 = vld [vmem:[#allocation6] sm:$0xff]
        %v419 = vadd.f32 %v361, 0.0
        %v420 = vadd.f32 %v418, %v419
        %421 = vst [vmem:[#allocation6] sm:$0xff] %v420
        // Predicated region
        $region57: #{tpu_custom_call.1} parent=35 // pred_check
          %p422 = pneg %p349
        $region58: #{tpu_custom_call.1} parent=35 // pred_check_branch
          %424 = sbr.rel (%p422) target = $region60
        $region59: #{tpu_custom_call.1} parent=35 // pred_region
          %v425 = vld [vmem:[#allocation2] sm:$0xff]
          %426 = vst [vmem:[%s344] sm:$0xff] %v425
          %v427 = vld [vmem:[#allocation3] sm:$0xff]
          %s428 = scalar_lea.vmem %s344, 8 [#allocation15]
          %429 = vst [vmem:[%s428] sm:$0xff] %v427
          %v430 = vld [vmem:[#allocation4] sm:$0xff]
          %s431 = scalar_lea.vmem %s344, 16 [#allocation15]
          %432 = vst [vmem:[%s431] sm:$0xff] %v430
          %v433 = vld [vmem:[#allocation5] sm:$0xff]
          %s434 = scalar_lea.vmem %s344, 24 [#allocation15]
          %435 = vst [vmem:[%s434] sm:$0xff] %v433
          %v436 = vld [vmem:[#allocation6] sm:$0xff]
          %s437 = scalar_lea.vmem %s344, 32 [#allocation15]
          %438 = vst [vmem:[%s437] sm:$0xff] %v436
        $region60: #{tpu_custom_call.1} parent=35 // pred_fallthru
          _
        %s439 = sand.u32 %s159, 1
        %s440 = scalar_lea.sflag [#allocation9], %s439
        %s441 = sand.u32 %s159, 1
        %s442 = smul.addr %s441, 40
        %s443 = scalar_lea.vmem [#allocation15], %s442
        // Predicated region
        $region61: #{tpu_custom_call.1} parent=35 // pred_check
          %p444 = pneg %p169
        $region62: #{tpu_custom_call.1} parent=35 // pred_check_branch
          %446 = sbr.rel (%p444) target = $region64
        $region63: #{tpu_custom_call.1} parent=35 // pred_region
          %s448 = ssub.s32 640, 640
          %449 = vsyncadd %s440, %s448
          %s450 = smul.addr %s31, 5
          %s451 = smul.addr %s450, 128
          %s452 = scalar_lea.hbm %s4, %s451
          %s453 = sshll.u32 %s443, 4
          %s454 = int_to_ptr.vmem [resolvable:$true] %s453
          %459 = dma.vmem_to_hbm [thread:$0]  %s454, 640, %s452, %s440, 128, 128, 8
        $region64: #{tpu_custom_call.1} parent=35 // pred_fallthru
          _
      $region36: #{tpu_custom_call.1} parent=5 // pred_fallthru
        _
      %p460 = scmp.le.s32.totalorder 2, %s22
      // Predicated region
      $region65: #{tpu_custom_call.1} parent=5 // pred_check
        %p461 = pneg %p460
      $region66: #{tpu_custom_call.1} parent=5 // pred_check_branch
        %463 = sbr.rel (%p461) target = $region68
      $region67: #{tpu_custom_call.1} parent=5 // pred_region
        %s464 = ssub.s32 %s22, 2
        // Predicated region
        $region69: #{tpu_custom_call.1} parent=67 // pred_check
          %p465 = pneg %p175
        $region70: #{tpu_custom_call.1} parent=67 // pred_check_branch
          %467 = sbr.rel (%p465) target = $region72
        $region71: #{tpu_custom_call.1} parent=67 // pred_region
          %s468 = sand.u32 %s160, 1
          %s469 = scalar_lea.sflag [#allocation9], %s468
          %s470 = sand.u32 %s160, 1
          %s471 = smul.addr %s470, 40
          %s472 = scalar_lea.vmem [#allocation15], %s471
          %473 = dma.done %s469, 640
        $region72: #{tpu_custom_call.1} parent=67 // pred_fallthru
          _
      $region68: #{tpu_custom_call.1} parent=5 // pred_fallthru
        _
    $region6: #{tpu_custom_call.1} parent=1 // loop_footer
      %s26 = sadd.s32 1, %s22
    $region7: #{tpu_custom_call.1} parent=1 // loop_footer_branch
      %21 = sbr.rel target = $region3
    $region8: #{tpu_custom_call.1} parent=1 // loop_exit
      _
    %474 = vsyncpa [#allocation8], 1
    %s475 = scalar_lea.sflag [#allocation8], 1
    %476 = vsyncpa %s475, 1
    %477 = vsyncpa [#allocation11], 1
    %s478 = scalar_lea.sflag [#allocation11], 1
    %479 = vsyncpa %s478, 1
    %480 = vsyncpa [#allocation14], 1
    %s481 = scalar_lea.sflag [#allocation14], 1
    %482 = vsyncpa %s481, 1
    %483 = vsyncpa [#allocation9], 1
    %s484 = scalar_lea.sflag [#allocation9], 1
    %485 = vsyncpa %s484, 1

</llo_original>
